<compile_context>
chip_gen: v6e
topology: v6e:2x2x1
jax: 0.10.0
libtpu: 0.0.40
codegen_flags: <defaults>
</compile_context>

<pallas_src>
import jax
import jax.numpy as jnp
from jax import lax
from jax.experimental import pallas as pl
from jax.experimental.pallas import tpu as pltpu

_EPS = 1e-5


# ----------------------------------------------------------------------------
# Pallas kernel
# ----------------------------------------------------------------------------
def _make_kernel(H, W, C, Cout, stride):
    Ho = (H - 1) // stride + 1
    Wo = (W - 1) // stride + 1

    def kernel(xp_ref, wd_ref, t1_ref, w2_ref, t2_ref, out_ref):
        # xp_ref: (H+2, W+2, C)  spatially pre-padded input (batch dim squeezed)
        # wd_ref: (3, 3, C)      depthwise weights with BN scale folded in
        # t1_ref: (1, C)         depthwise BN shift
        # w2_ref: (C, Cout)      pointwise weights with BN scale folded in
        # t2_ref: (1, Cout)      pointwise BN shift
        # out_ref: (Ho*Wo, Cout) lane-contiguous 2-D output slab for this image

        # ---- (1) 3x3 depthwise conv (stride, padding pre-applied) + BN + ReLU ----
        acc = jnp.zeros((Ho, Wo, C), jnp.float32)
        for kh in range(3):
            for kw in range(3):
                if stride == 1:
                    tap = xp_ref[pl.ds(kh, Ho), pl.ds(kw, Wo), :]
                else:
                    tap = xp_ref[pl.ds(kh, Ho, stride=stride),
                                 pl.ds(kw, Wo, stride=stride), :]
                wtap = wd_ref[kh, kw, :].reshape(1, 1, C)
                acc = acc + tap.astype(jnp.float32) * wtap
        h1 = jnp.maximum(acc + t1_ref[...].reshape(1, 1, C), 0.0)

        # ---- (2) 1x1 pointwise conv + BN + ReLU (MXU, default precision) ----
        out2d = jnp.dot(h1.reshape(Ho * Wo, C), w2_ref[...],
                        preferred_element_type=jnp.float32)
        out_ref[...] = jnp.maximum(out2d + t2_ref[...], 0.0).astype(out_ref.dtype)

    return kernel, Ho, Wo


def dsconv_forward(x_nchw, folded, *, stride):
    """folded = (wd_f[3,3,C], t1[1,C], w2_f[C,Cout], t2[1,Cout])."""
    N, C, H, W = x_nchw.shape
    wd_f, t1, w2_f, t2 = folded
    Cout = w2_f.shape[1]

    kernel, Ho, Wo = _make_kernel(H, W, C, Cout, stride)

    # Layout plumbing stays in the wrapper: NCHW -> NHWC, then pre-pad the halo.
    x_nhwc = jnp.transpose(x_nchw, (0, 2, 3, 1))
    x_pad = jnp.pad(x_nhwc, ((0, 0), (1, 1), (1, 1), (0, 0)))

    flops = int(N * (18 * Ho * Wo * C + 2 * Ho * Wo * C * Cout))
    bytes_accessed = int(4 * (x_pad.size + N * Ho * Wo * Cout
                              + wd_f.size + t1.size + w2_f.size + t2.size))
    cost = pl.CostEstimate(flops=flops, transcendentals=0,
                           bytes_accessed=bytes_accessed)

    out2d = pl.pallas_call(
        kernel,
        out_shape=jax.ShapeDtypeStruct((N, Ho * Wo, Cout), jnp.float32),
        grid_spec=pltpu.PrefetchScalarGridSpec(
            num_scalar_prefetch=0,
            grid=(N,),                                          # one image per step
            in_specs=[
                pl.BlockSpec((None, H + 2, W + 2, C), lambda n: (n, 0, 0, 0)),
                pl.BlockSpec((3, 3, C), lambda n: (0, 0, 0)),
                pl.BlockSpec((1, C), lambda n: (0, 0)),
                pl.BlockSpec((C, Cout), lambda n: (0, 0)),
                pl.BlockSpec((1, Cout), lambda n: (0, 0)),
            ],
            out_specs=pl.BlockSpec((None, Ho * Wo, Cout), lambda n: (n, 0, 0)),
        ),
        compiler_params=pltpu.CompilerParams(
            dimension_semantics=("parallel",)),                 # v7x: 2 TCs
        cost_estimate=cost,
    )(x_pad, wd_f, t1, w2_f, t2)

    out_nhwc = out2d.reshape(N, Ho, Wo, Cout)
    return jnp.transpose(out_nhwc, (0, 3, 1, 2))                # back to NCHW


# ----------------------------------------------------------------------------
# Deterministic synthetic parameters (PyTorch shapes), BN folding, JAX reference
# ----------------------------------------------------------------------------
def init_raw_params(key, C, Cout):
    ks = jax.random.split(key, 10)
    f32 = jnp.float32
    wd = jax.random.normal(ks[0], (C, 1, 3, 3), f32) * 0.2      # depthwise [C,1,3,3]
    g1 = 1.0 + 0.1 * jax.random.normal(ks[1], (C,), f32)
    be1 = 0.1 * jax.random.normal(ks[2], (C,), f32)
    m1 = 0.1 * jax.random.normal(ks[3], (C,), f32)
    v1 = jax.random.uniform(ks[4], (C,), f32, 0.5, 1.5)
    w2 = jax.random.normal(ks[5], (Cout, C), f32) * 0.2         # pointwise [Cout,C,1,1]
    g2 = 1.0 + 0.1 * jax.random.normal(ks[6], (Cout,), f32)
    be2 = 0.1 * jax.random.normal(ks[7], (Cout,), f32)
    m2 = 0.1 * jax.random.normal(ks[8], (Cout,), f32)
    v2 = jax.random.uniform(ks[9], (Cout,), f32, 0.5, 1.5)
    return (wd, g1, be1, m1, v1, w2, g2, be2, m2, v2)


def fold_params(raw):
    """Fold eval-mode BN (scale) directly into the conv weights; keep shifts."""
    wd, g1, be1, m1, v1, w2, g2, be2, m2, v2 = raw
    s1 = g1 / jnp.sqrt(v1 + _EPS)
    s2 = g2 / jnp.sqrt(v2 + _EPS)
    wd_f = jnp.transpose(wd[:, 0], (1, 2, 0)) * s1[None, None, :]   # (3, 3, C)
    t1 = (be1 - m1 * s1)[None, :]                                   # (1, C)
    w2_f = jnp.transpose(w2) * s2[None, :]                          # (C, Cout)
    t2 = (be2 - m2 * s2)[None, :]                                   # (1, Cout)
    return wd_f, t1, w2_f, t2


def ref_forward(x, raw, stride):
    """Pure-JAX f32 reference (HIGHEST precision) of the DSConv forward."""
    wd, g1, be1, m1, v1, w2, g2, be2, m2, v2 = raw
    dn = ('NCHW', 'OIHW', 'NCHW')
    C = wd.shape[0]

    def bn(h, g, be, m, v):
        return ((h - m[None, :, None, None])
                / jnp.sqrt(v + _EPS)[None, :, None, None]
                * g[None, :, None, None] + be[None, :, None, None])

    h = lax.conv_general_dilated(x, wd, (stride, stride), [(1, 1), (1, 1)],
                                 dimension_numbers=dn, feature_group_count=C,
                                 precision=lax.Precision.HIGHEST)
    h = jnp.maximum(bn(h, g1, be1, m1, v1), 0.0)
    h = lax.conv_general_dilated(h, w2[:, :, None, None], (1, 1), [(0, 0), (0, 0)],
                                 dimension_numbers=dn,
                                 precision=lax.Precision.HIGHEST)
    h = jnp.maximum(bn(h, g2, be2, m2, v2), 0.0)
    return h


# ----------------------------------------------------------------------------
if __name__ == "__main__":
    key = jax.random.PRNGKey(0)
    kx, kp1, kp2 = jax.random.split(key, 3)

    N, C, H, W = 2, 4, 16, 16
    x = jax.random.normal(kx, (N, C, H, W), jnp.float32)

    # Tolerance covers default-precision (bf16-input) MXU matmul vs. f32 reference.
    TOL = 2e-2

    # Config A: DSConv(4, 8, stride=2)
    Cout_a, stride_a = 8, 2
    raw_a = init_raw_params(kp1, C, Cout_a)
    out_a = jax.block_until_ready(
        dsconv_forward(x, fold_params(raw_a), stride=stride_a))
    ref_a = ref_forward(x, raw_a, stride_a)
    assert out_a.shape == (N, Cout_a, (H - 1) // stride_a + 1, (W - 1) // stride_a + 1)
    err_a = float(jnp.max(jnp.abs(out_a - ref_a)))
    assert err_a < TOL, err_a

    # Config B: DSConv(4, 8, stride=1)
    Cout_b, stride_b = 8, 1
    raw_b = init_raw_params(kp2, C, Cout_b)
    out_b = jax.block_until_ready(
        dsconv_forward(x, fold_params(raw_b), stride=stride_b))
    ref_b = ref_forward(x, raw_b, stride_b)
    assert out_b.shape == (N, Cout_b, H, W)
    err_b = float(jnp.max(jnp.abs(out_b - ref_b)))
    assert err_b < TOL, err_b

    print("KERNEL_OK")
</pallas_src>

<mosaic_0001>
module attributes {stable_mosaic.version = 11 : i64} {
  func.func @kernel(%arg0: i32, %arg1: memref<1x18x18x4xf32, #tpu.memory_space<vmem>>, %arg2: memref<3x3x4xf32, #tpu.memory_space<vmem>>, %arg3: memref<1x4xf32, #tpu.memory_space<vmem>>, %arg4: memref<4x8xf32, #tpu.memory_space<vmem>>, %arg5: memref<1x8xf32, #tpu.memory_space<vmem>>, %arg6: memref<1x64x8xf32, #tpu.memory_space<vmem>>) attributes {dimension_semantics = [#tpu.dimension_semantics<parallel>], iteration_bounds = array<i64: 2>, scalar_prefetch = 0 : i64, scratch_operands = 0 : i64, tpu.core_type = #tpu.core_type<tc>, window_params = [{transform_indices = @transform_0, window_bounds = array<i64: 1, 18, 18, 4>}, {pipeline_mode = #tpu.pipeline_mode<synchronous>, transform_indices = @transform_1, window_bounds = array<i64: 3, 3, 4>}, {pipeline_mode = #tpu.pipeline_mode<synchronous>, transform_indices = @transform_2, window_bounds = array<i64: 1, 4>}, {pipeline_mode = #tpu.pipeline_mode<synchronous>, transform_indices = @transform_3, window_bounds = array<i64: 4, 8>}, {pipeline_mode = #tpu.pipeline_mode<synchronous>, transform_indices = @transform_4, window_bounds = array<i64: 1, 8>}, {transform_indices = @transform_5, window_bounds = array<i64: 1, 64, 8>}]} {
    %cst = arith.constant 0.000000e+00 : f32
    %0 = vector.broadcast %cst : f32 to vector<8x8x4xf32>
    %c0 = arith.constant 0 : index
    %c0_0 = arith.constant 0 : index
    %c0_1 = arith.constant 0 : index
    %c0_2 = arith.constant 0 : index
    %1 = tpu.strided_load %arg1[%c0, %c0_0, %c0_1, %c0_2] {strides = array<i32: 1, 2, 2, 1>} : memref<1x18x18x4xf32, #tpu.memory_space<vmem>>, vector<1x8x8x4xf32>
    %2 = vector.shape_cast %1 : vector<1x8x8x4xf32> to vector<8x8x4xf32>
    %c0_3 = arith.constant 0 : index
    %c0_4 = arith.constant 0 : index
    %c0_5 = arith.constant 0 : index
    %3 = vector.load %arg2[%c0_3, %c0_4, %c0_5] : memref<3x3x4xf32, #tpu.memory_space<vmem>>, vector<1x1x4xf32>
    %4 = vector.shape_cast %3 : vector<1x1x4xf32> to vector<4xf32>
    %5 = vector.shape_cast %4 : vector<4xf32> to vector<1x1x4xf32>
    %6 = vector.broadcast %5 : vector<1x1x4xf32> to vector<8x8x4xf32>
    %7 = arith.mulf %2, %6 : vector<8x8x4xf32>
    %8 = arith.addf %0, %7 : vector<8x8x4xf32>
    %c0_6 = arith.constant 0 : index
    %c0_7 = arith.constant 0 : index
    %c1 = arith.constant 1 : index
    %c0_8 = arith.constant 0 : index
    %9 = tpu.strided_load %arg1[%c0_6, %c0_7, %c1, %c0_8] {strides = array<i32: 1, 2, 2, 1>} : memref<1x18x18x4xf32, #tpu.memory_space<vmem>>, vector<1x8x8x4xf32>
    %10 = vector.shape_cast %9 : vector<1x8x8x4xf32> to vector<8x8x4xf32>
    %c0_9 = arith.constant 0 : index
    %c1_10 = arith.constant 1 : index
    %c0_11 = arith.constant 0 : index
    %11 = vector.load %arg2[%c0_9, %c1_10, %c0_11] : memref<3x3x4xf32, #tpu.memory_space<vmem>>, vector<1x1x4xf32>
    %12 = vector.shape_cast %11 : vector<1x1x4xf32> to vector<4xf32>
    %13 = vector.shape_cast %12 : vector<4xf32> to vector<1x1x4xf32>
    %14 = vector.broadcast %13 : vector<1x1x4xf32> to vector<8x8x4xf32>
    %15 = arith.mulf %10, %14 : vector<8x8x4xf32>
    %16 = arith.addf %8, %15 : vector<8x8x4xf32>
    %c0_12 = arith.constant 0 : index
    %c0_13 = arith.constant 0 : index
    %c2 = arith.constant 2 : index
    %c0_14 = arith.constant 0 : index
    %17 = tpu.strided_load %arg1[%c0_12, %c0_13, %c2, %c0_14] {strides = array<i32: 1, 2, 2, 1>} : memref<1x18x18x4xf32, #tpu.memory_space<vmem>>, vector<1x8x8x4xf32>
    %18 = vector.shape_cast %17 : vector<1x8x8x4xf32> to vector<8x8x4xf32>
    %c0_15 = arith.constant 0 : index
    %c2_16 = arith.constant 2 : index
    %c0_17 = arith.constant 0 : index
    %19 = vector.load %arg2[%c0_15, %c2_16, %c0_17] : memref<3x3x4xf32, #tpu.memory_space<vmem>>, vector<1x1x4xf32>
    %20 = vector.shape_cast %19 : vector<1x1x4xf32> to vector<4xf32>
    %21 = vector.shape_cast %20 : vector<4xf32> to vector<1x1x4xf32>
    %22 = vector.broadcast %21 : vector<1x1x4xf32> to vector<8x8x4xf32>
    %23 = arith.mulf %18, %22 : vector<8x8x4xf32>
    %24 = arith.addf %16, %23 : vector<8x8x4xf32>
    %c0_18 = arith.constant 0 : index
    %c1_19 = arith.constant 1 : index
    %c0_20 = arith.constant 0 : index
    %c0_21 = arith.constant 0 : index
    %25 = tpu.strided_load %arg1[%c0_18, %c1_19, %c0_20, %c0_21] {strides = array<i32: 1, 2, 2, 1>} : memref<1x18x18x4xf32, #tpu.memory_space<vmem>>, vector<1x8x8x4xf32>
    %26 = vector.shape_cast %25 : vector<1x8x8x4xf32> to vector<8x8x4xf32>
    %c1_22 = arith.constant 1 : index
    %c0_23 = arith.constant 0 : index
    %c0_24 = arith.constant 0 : index
    %27 = vector.load %arg2[%c1_22, %c0_23, %c0_24] : memref<3x3x4xf32, #tpu.memory_space<vmem>>, vector<1x1x4xf32>
    %28 = vector.shape_cast %27 : vector<1x1x4xf32> to vector<4xf32>
    %29 = vector.shape_cast %28 : vector<4xf32> to vector<1x1x4xf32>
    %30 = vector.broadcast %29 : vector<1x1x4xf32> to vector<8x8x4xf32>
    %31 = arith.mulf %26, %30 : vector<8x8x4xf32>
    %32 = arith.addf %24, %31 : vector<8x8x4xf32>
    %c0_25 = arith.constant 0 : index
    %c1_26 = arith.constant 1 : index
    %c1_27 = arith.constant 1 : index
    %c0_28 = arith.constant 0 : index
    %33 = tpu.strided_load %arg1[%c0_25, %c1_26, %c1_27, %c0_28] {strides = array<i32: 1, 2, 2, 1>} : memref<1x18x18x4xf32, #tpu.memory_space<vmem>>, vector<1x8x8x4xf32>
    %34 = vector.shape_cast %33 : vector<1x8x8x4xf32> to vector<8x8x4xf32>
    %c1_29 = arith.constant 1 : index
    %c1_30 = arith.constant 1 : index
    %c0_31 = arith.constant 0 : index
    %35 = vector.load %arg2[%c1_29, %c1_30, %c0_31] : memref<3x3x4xf32, #tpu.memory_space<vmem>>, vector<1x1x4xf32>
    %36 = vector.shape_cast %35 : vector<1x1x4xf32> to vector<4xf32>
    %37 = vector.shape_cast %36 : vector<4xf32> to vector<1x1x4xf32>
    %38 = vector.broadcast %37 : vector<1x1x4xf32> to vector<8x8x4xf32>
    %39 = arith.mulf %34, %38 : vector<8x8x4xf32>
    %40 = arith.addf %32, %39 : vector<8x8x4xf32>
    %c0_32 = arith.constant 0 : index
    %c1_33 = arith.constant 1 : index
    %c2_34 = arith.constant 2 : index
    %c0_35 = arith.constant 0 : index
    %41 = tpu.strided_load %arg1[%c0_32, %c1_33, %c2_34, %c0_35] {strides = array<i32: 1, 2, 2, 1>} : memref<1x18x18x4xf32, #tpu.memory_space<vmem>>, vector<1x8x8x4xf32>
    %42 = vector.shape_cast %41 : vector<1x8x8x4xf32> to vector<8x8x4xf32>
    %c1_36 = arith.constant 1 : index
    %c2_37 = arith.constant 2 : index
    %c0_38 = arith.constant 0 : index
    %43 = vector.load %arg2[%c1_36, %c2_37, %c0_38] : memref<3x3x4xf32, #tpu.memory_space<vmem>>, vector<1x1x4xf32>
    %44 = vector.shape_cast %43 : vector<1x1x4xf32> to vector<4xf32>
    %45 = vector.shape_cast %44 : vector<4xf32> to vector<1x1x4xf32>
    %46 = vector.broadcast %45 : vector<1x1x4xf32> to vector<8x8x4xf32>
    %47 = arith.mulf %42, %46 : vector<8x8x4xf32>
    %48 = arith.addf %40, %47 : vector<8x8x4xf32>
    %c0_39 = arith.constant 0 : index
    %c2_40 = arith.constant 2 : index
    %c0_41 = arith.constant 0 : index
    %c0_42 = arith.constant 0 : index
    %49 = tpu.strided_load %arg1[%c0_39, %c2_40, %c0_41, %c0_42] {strides = array<i32: 1, 2, 2, 1>} : memref<1x18x18x4xf32, #tpu.memory_space<vmem>>, vector<1x8x8x4xf32>
    %50 = vector.shape_cast %49 : vector<1x8x8x4xf32> to vector<8x8x4xf32>
    %c2_43 = arith.constant 2 : index
    %c0_44 = arith.constant 0 : index
    %c0_45 = arith.constant 0 : index
    %51 = vector.load %arg2[%c2_43, %c0_44, %c0_45] : memref<3x3x4xf32, #tpu.memory_space<vmem>>, vector<1x1x4xf32>
    %52 = vector.shape_cast %51 : vector<1x1x4xf32> to vector<4xf32>
    %53 = vector.shape_cast %52 : vector<4xf32> to vector<1x1x4xf32>
    %54 = vector.broadcast %53 : vector<1x1x4xf32> to vector<8x8x4xf32>
    %55 = arith.mulf %50, %54 : vector<8x8x4xf32>
    %56 = arith.addf %48, %55 : vector<8x8x4xf32>
    %c0_46 = arith.constant 0 : index
    %c2_47 = arith.constant 2 : index
    %c1_48 = arith.constant 1 : index
    %c0_49 = arith.constant 0 : index
    %57 = tpu.strided_load %arg1[%c0_46, %c2_47, %c1_48, %c0_49] {strides = array<i32: 1, 2, 2, 1>} : memref<1x18x18x4xf32, #tpu.memory_space<vmem>>, vector<1x8x8x4xf32>
    %58 = vector.shape_cast %57 : vector<1x8x8x4xf32> to vector<8x8x4xf32>
    %c2_50 = arith.constant 2 : index
    %c1_51 = arith.constant 1 : index
    %c0_52 = arith.constant 0 : index
    %59 = vector.load %arg2[%c2_50, %c1_51, %c0_52] : memref<3x3x4xf32, #tpu.memory_space<vmem>>, vector<1x1x4xf32>
    %60 = vector.shape_cast %59 : vector<1x1x4xf32> to vector<4xf32>
    %61 = vector.shape_cast %60 : vector<4xf32> to vector<1x1x4xf32>
    %62 = vector.broadcast %61 : vector<1x1x4xf32> to vector<8x8x4xf32>
    %63 = arith.mulf %58, %62 : vector<8x8x4xf32>
    %64 = arith.addf %56, %63 : vector<8x8x4xf32>
    %c0_53 = arith.constant 0 : index
    %c2_54 = arith.constant 2 : index
    %c2_55 = arith.constant 2 : index
    %c0_56 = arith.constant 0 : index
    %65 = tpu.strided_load %arg1[%c0_53, %c2_54, %c2_55, %c0_56] {strides = array<i32: 1, 2, 2, 1>} : memref<1x18x18x4xf32, #tpu.memory_space<vmem>>, vector<1x8x8x4xf32>
    %66 = vector.shape_cast %65 : vector<1x8x8x4xf32> to vector<8x8x4xf32>
    %c2_57 = arith.constant 2 : index
    %c2_58 = arith.constant 2 : index
    %c0_59 = arith.constant 0 : index
    %67 = vector.load %arg2[%c2_57, %c2_58, %c0_59] : memref<3x3x4xf32, #tpu.memory_space<vmem>>, vector<1x1x4xf32>
    %68 = vector.shape_cast %67 : vector<1x1x4xf32> to vector<4xf32>
    %69 = vector.shape_cast %68 : vector<4xf32> to vector<1x1x4xf32>
    %70 = vector.broadcast %69 : vector<1x1x4xf32> to vector<8x8x4xf32>
    %71 = arith.mulf %66, %70 : vector<8x8x4xf32>
    %72 = arith.addf %64, %71 : vector<8x8x4xf32>
    %c0_60 = arith.constant 0 : index
    %c0_61 = arith.constant 0 : index
    %73 = vector.load %arg3[%c0_60, %c0_61] : memref<1x4xf32, #tpu.memory_space<vmem>>, vector<1x4xf32>
    %74 = vector.shape_cast %73 : vector<1x4xf32> to vector<1x1x4xf32>
    %75 = vector.broadcast %74 : vector<1x1x4xf32> to vector<8x8x4xf32>
    %76 = arith.addf %72, %75 : vector<8x8x4xf32>
    %cst_62 = arith.constant 0.000000e+00 : f32
    %77 = vector.broadcast %cst_62 : f32 to vector<8x8x4xf32>
    %78 = arith.maximumf %76, %77 : vector<8x8x4xf32>
    %79 = vector.shape_cast %78 : vector<8x8x4xf32> to vector<64x4xf32>
    %c0_63 = arith.constant 0 : index
    %c0_64 = arith.constant 0 : index
    %80 = vector.load %arg4[%c0_63, %c0_64] : memref<4x8xf32, #tpu.memory_space<vmem>>, vector<4x8xf32>
    %cst_65 = arith.constant dense<0.000000e+00> : vector<64x8xf32>
    %81 = tpu.matmul %79, %80, %cst_65 {dimension_numbers = #tpu.dot_dimension_numbers<[1], [0], [0], [1], [0, 0, 1, 1], [], []>} : vector<64x4xf32>, vector<4x8xf32>, vector<64x8xf32> -> vector<64x8xf32>
    %c0_66 = arith.constant 0 : index
    %c0_67 = arith.constant 0 : index
    %82 = vector.load %arg5[%c0_66, %c0_67] : memref<1x8xf32, #tpu.memory_space<vmem>>, vector<1x8xf32>
    %83 = vector.broadcast %82 : vector<1x8xf32> to vector<64x8xf32>
    %84 = arith.addf %81, %83 : vector<64x8xf32>
    %cst_68 = arith.constant 0.000000e+00 : f32
    %85 = vector.broadcast %cst_68 : f32 to vector<64x8xf32>
    %86 = arith.maximumf %84, %85 : vector<64x8xf32>
    %c0_69 = arith.constant 0 : index
    %c0_70 = arith.constant 0 : index
    %c0_71 = arith.constant 0 : index
    %87 = vector.load %arg6[%c0_69, %c0_70, %c0_71] : memref<1x64x8xf32, #tpu.memory_space<vmem>>, vector<1x64x8xf32>
    %88 = vector.shape_cast %87 : vector<1x64x8xf32> to vector<64x8xf32>
    %89 = vector.shape_cast %86 : vector<64x8xf32> to vector<1x64x8xf32>
    tpu.vector_store %arg6[%c0_69, %c0_70, %c0_71], %89 {strides = array<i32>} : memref<1x64x8xf32, #tpu.memory_space<vmem>>, vector<1x64x8xf32>,
    return
  }
  func.func @transform_0(%arg0: i32) -> (i32, i32, i32, i32) {
    %c0_i32 = arith.constant 0 : i32
    %c0_i32_0 = arith.constant 0 : i32
    %c0_i32_1 = arith.constant 0 : i32
    %c0_i32_2 = arith.constant 0 : i32
    return %arg0, %c0_i32, %c0_i32_0, %c0_i32_1 : i32, i32, i32, i32
  }
  func.func @transform_1(%arg0: i32) -> (i32, i32, i32) {
    %c0_i32 = arith.constant 0 : i32
    %c0_i32_0 = arith.constant 0 : i32
    %c0_i32_1 = arith.constant 0 : i32
    %c0_i32_2 = arith.constant 0 : i32
    return %c0_i32, %c0_i32_0, %c0_i32_1 : i32, i32, i32
  }
  func.func @transform_2(%arg0: i32) -> (i32, i32) {
    %c0_i32 = arith.constant 0 : i32
    %c0_i32_0 = arith.constant 0 : i32
    %c0_i32_1 = arith.constant 0 : i32
    return %c0_i32, %c0_i32_0 : i32, i32
  }
  func.func @transform_3(%arg0: i32) -> (i32, i32) {
    %c0_i32 = arith.constant 0 : i32
    %c0_i32_0 = arith.constant 0 : i32
    %c0_i32_1 = arith.constant 0 : i32
    return %c0_i32, %c0_i32_0 : i32, i32
  }
  func.func @transform_4(%arg0: i32) -> (i32, i32) {
    %c0_i32 = arith.constant 0 : i32
    %c0_i32_0 = arith.constant 0 : i32
    %c0_i32_1 = arith.constant 0 : i32
    return %c0_i32, %c0_i32_0 : i32, i32
  }
  func.func @transform_5(%arg0: i32) -> (i32, i32, i32) {
    %c0_i32 = arith.constant 0 : i32
    %c0_i32_0 = arith.constant 0 : i32
    %c0_i32_1 = arith.constant 0 : i32
    return %arg0, %c0_i32, %c0_i32_0 : i32, i32, i32
  }
}

</mosaic_0001>

<llo_original>
// kernel: tpu_custom_call.1
$region0: #{tpu_custom_call.1}
  #allocation0 [shape = 'u32[]', space=smem, size = 0x4, offset = 0x4, fixed_abs, tag = 'smem constant byte address 0x4 - core index']
  #allocation1 [shape = 'u32[144,128]{1,0:T(1,128)}', space=vmem, size = 0x12000, scoped, tag = 'internal scratch']
  %s0 = inlined_call_operand.vmem [shape: f32[2,18,18,4], index: 0, kind: input, shape index: {}]
  %s1 = inlined_call_operand.vmem [shape: f32[3,3,4], index: 1, kind: input, shape index: {}]
  %s2 = inlined_call_operand.vmem [shape: f32[1,4], index: 2, kind: input, shape index: {}]
  %s3 = inlined_call_operand.vmem [shape: f32[4,8], index: 3, kind: input, shape index: {}]
  %s4 = inlined_call_operand.vmem [shape: f32[1,8], index: 4, kind: input, shape index: {}]
  %s5 = inlined_call_operand.vmem [shape: f32[2,64,8], index: 5, kind: output, shape index: {}]
  %s6 = sld [smem:[#allocation0]]
  $region53: #{tpu_custom_call.1} parent=0
    _
  %s8 = ssub.s32 1, %s6
  %s9 = scalar_select 0, %s8, %s6
  loop: start=0, step=1, limit=4
  $region2: #{tpu_custom_call.1} parent=0 // loop_pre_header
    _
  $region3: #{tpu_custom_call.1} parent=0 // loop_header
    %s11 = sphi 0, %s15
    %p12 = scmp.ge.s32.totalorder %s11, 4
    %s21 = sphi 0, %s23
    %s24 = sphi 0, %s21
    %s25 = sphi 0, %s24
    %s41 = sphi 0, %s25
    %s45 = sphi 0, %s45
    %s47 = sphi 0, %s45
    %s48 = sphi 0, %s47
    %s62 = sphi 0, %s48
    %s66 = sphi 0, %s66
    %s68 = sphi 0, %s66
    %s69 = sphi 0, %s68
    %s83 = sphi 0, %s69
    %s87 = sphi 0, %s87
    %s89 = sphi 0, %s87
    %s90 = sphi 0, %s89
    %s104 = sphi 0, %s90
    %s108 = sphi 0, %s108
    %s110 = sphi 0, %s108
    %s111 = sphi 0, %s110
    %s125 = sphi 0, %s111
    %s131 = sphi 0, %s133
    %s134 = sphi 0, %s131
    %s135 = sphi 0, %s134
    %s151 = sphi 0, %s135
  $region4: #{tpu_custom_call.1} parent=0 // loop_header_branch
    %14 = sbr.rel (%p12) target = $region8
  $region5: #{tpu_custom_call.1} parent=0 // loop_body
    %s16 = ssub.s32 %s11, 1
    %s17 = ssub.s32 %s11, 2
    %s18 = sadd.s32 %s11, 1
    %s19 = ssub.s32 %s11, %s18
    %p20 = scmp.eq.s32.totalorder %s19, 0
    %s22 = sadd.s32 %s21, 1
    %s23 = scalar_select %p20, %s21, %s22
    %p26 = pneg %p20
    %p27 = scmp.eq.s32.totalorder %s11, 1
    %p28 = por %p26, %p27
    %p29 = scmp.ne.s32.totalorder %s21, %s24
    %p30 = scmp.eq.s32.totalorder %s11, 0
    %p31 = por %p29, %p30
    %p32 = scmp.ne.s32.totalorder %s21, %s24
    %p33 = scmp.eq.s32.totalorder %s16, 1
    %p34 = por %p32, %p33
    %p35 = scmp.ne.s32.totalorder %s24, %s25
    %p36 = scmp.eq.s32.totalorder %s16, 0
    %p37 = por %p35, %p36
    %p38 = scmp.ne.s32.totalorder %s24, %s25
    %p39 = scmp.eq.s32.totalorder %s17, 1
    %p40 = por %p38, %p39
    %p42 = scmp.ne.s32.totalorder %s25, %s41
    %p43 = scmp.eq.s32.totalorder %s17, 0
    %p44 = por %p42, %p43
    %s46 = sadd.s32 %s45, 1
    %p49 = scmp.eq.s32.totalorder %s11, 1
    %p50 = scmp.ne.s32.totalorder %s45, %s47
    %p51 = scmp.eq.s32.totalorder %s11, 0
    %p52 = por %p50, %p51
    %p53 = scmp.ne.s32.totalorder %s45, %s47
    %p54 = scmp.eq.s32.totalorder %s16, 1
    %p55 = por %p53, %p54
    %p56 = scmp.ne.s32.totalorder %s47, %s48
    %p57 = scmp.eq.s32.totalorder %s16, 0
    %p58 = por %p56, %p57
    %p59 = scmp.ne.s32.totalorder %s47, %s48
    %p60 = scmp.eq.s32.totalorder %s17, 1
    %p61 = por %p59, %p60
    %p63 = scmp.ne.s32.totalorder %s48, %s62
    %p64 = scmp.eq.s32.totalorder %s17, 0
    %p65 = por %p63, %p64
    %s67 = sadd.s32 %s66, 1
    %p70 = scmp.eq.s32.totalorder %s11, 1
    %p71 = scmp.ne.s32.totalorder %s66, %s68
    %p72 = scmp.eq.s32.totalorder %s11, 0
    %p73 = por %p71, %p72
    %p74 = scmp.ne.s32.totalorder %s66, %s68
    %p75 = scmp.eq.s32.totalorder %s16, 1
    %p76 = por %p74, %p75
    %p77 = scmp.ne.s32.totalorder %s68, %s69
    %p78 = scmp.eq.s32.totalorder %s16, 0
    %p79 = por %p77, %p78
    %p80 = scmp.ne.s32.totalorder %s68, %s69
    %p81 = scmp.eq.s32.totalorder %s17, 1
    %p82 = por %p80, %p81
    %p84 = scmp.ne.s32.totalorder %s69, %s83
    %p85 = scmp.eq.s32.totalorder %s17, 0
    %p86 = por %p84, %p85
    %s88 = sadd.s32 %s87, 1
    %p91 = scmp.eq.s32.totalorder %s11, 1
    %p92 = scmp.ne.s32.totalorder %s87, %s89
    %p93 = scmp.eq.s32.totalorder %s11, 0
    %p94 = por %p92, %p93
    %p95 = scmp.ne.s32.totalorder %s87, %s89
    %p96 = scmp.eq.s32.totalorder %s16, 1
    %p97 = por %p95, %p96
    %p98 = scmp.ne.s32.totalorder %s89, %s90
    %p99 = scmp.eq.s32.totalorder %s16, 0
    %p100 = por %p98, %p99
    %p101 = scmp.ne.s32.totalorder %s89, %s90
    %p102 = scmp.eq.s32.totalorder %s17, 1
    %p103 = por %p101, %p102
    %p105 = scmp.ne.s32.totalorder %s90, %s104
    %p106 = scmp.eq.s32.totalorder %s17, 0
    %p107 = por %p105, %p106
    %s109 = sadd.s32 %s108, 1
    %p112 = scmp.eq.s32.totalorder %s11, 1
    %p113 = scmp.ne.s32.totalorder %s108, %s110
    %p114 = scmp.eq.s32.totalorder %s11, 0
    %p115 = por %p113, %p114
    %p116 = scmp.ne.s32.totalorder %s108, %s110
    %p117 = scmp.eq.s32.totalorder %s16, 1
    %p118 = por %p116, %p117
    %p119 = scmp.ne.s32.totalorder %s110, %s111
    %p120 = scmp.eq.s32.totalorder %s16, 0
    %p121 = por %p119, %p120
    %p122 = scmp.ne.s32.totalorder %s110, %s111
    %p123 = scmp.eq.s32.totalorder %s17, 1
    %p124 = por %p122, %p123
    %p126 = scmp.ne.s32.totalorder %s111, %s125
    %p127 = scmp.eq.s32.totalorder %s17, 0
    %p128 = por %p126, %p127
    %s129 = ssub.s32 %s11, %s18
    %p130 = scmp.eq.s32.totalorder %s129, 0
    %s132 = sadd.s32 %s131, 1
    %s133 = scalar_select %p130, %s131, %s132
    %p136 = pneg %p130
    %p137 = scmp.eq.s32.totalorder %s11, 1
    %p138 = por %p136, %p137
    %p139 = scmp.ne.s32.totalorder %s131, %s134
    %p140 = scmp.eq.s32.totalorder %s11, 0
    %p141 = por %p139, %p140
    %p142 = scmp.ne.s32.totalorder %s131, %s134
    %p143 = scmp.eq.s32.totalorder %s16, 1
    %p144 = por %p142, %p143
    %p145 = scmp.ne.s32.totalorder %s134, %s135
    %p146 = scmp.eq.s32.totalorder %s16, 0
    %p147 = por %p145, %p146
    %p148 = scmp.ne.s32.totalorder %s134, %s135
    %p149 = scmp.eq.s32.totalorder %s17, 1
    %p150 = por %p148, %p149
    %p152 = scmp.ne.s32.totalorder %s135, %s151
    %p153 = scmp.eq.s32.totalorder %s17, 0
    %p154 = por %p152, %p153
    %p155 = scmp.le.s32.totalorder 1, %s11
    %p156 = scmp.lt.s32.totalorder %s11, 3
    %p157 = pnand %p155, %p156
    %p158 = pneg %p157
    // Predicated region
    $region9: #{tpu_custom_call.1} parent=5 // pred_check
      _
    $region10: #{tpu_custom_call.1} parent=5 // pred_check_branch
      %160 = sbr.rel (%p157) target = $region12
    $region11: #{tpu_custom_call.1} parent=5 // pred_region
      %s161 = ssub.s32 %s11, 1
      // Predicated region
      $region13: #{tpu_custom_call.1} parent=11 // pred_check
        %p162 = pneg %p58
      $region14: #{tpu_custom_call.1} parent=11 // pred_check_branch
        %164 = sbr.rel (%p162) target = $region16
      $region15: #{tpu_custom_call.1} parent=11 // pred_region
        _
      $region16: #{tpu_custom_call.1} parent=11 // pred_fallthru
        _
      // Predicated region
      $region17: #{tpu_custom_call.1} parent=11 // pred_check
        %p165 = pneg %p79
      $region18: #{tpu_custom_call.1} parent=11 // pred_check_branch
        %167 = sbr.rel (%p165) target = $region20
      $region19: #{tpu_custom_call.1} parent=11 // pred_region
        _
      $region20: #{tpu_custom_call.1} parent=11 // pred_fallthru
        _
      // Predicated region
      $region21: #{tpu_custom_call.1} parent=11 // pred_check
        %p168 = pneg %p100
      $region22: #{tpu_custom_call.1} parent=11 // pred_check_branch
        %170 = sbr.rel (%p168) target = $region24
      $region23: #{tpu_custom_call.1} parent=11 // pred_region
        _
      $region24: #{tpu_custom_call.1} parent=11 // pred_fallthru
        _
      // Predicated region
      $region25: #{tpu_custom_call.1} parent=11 // pred_check
        %p171 = pneg %p121
      $region26: #{tpu_custom_call.1} parent=11 // pred_check_branch
        %173 = sbr.rel (%p171) target = $region28
      $region27: #{tpu_custom_call.1} parent=11 // pred_region
        _
      $region28: #{tpu_custom_call.1} parent=11 // pred_fallthru
        _
    $region12: #{tpu_custom_call.1} parent=5 // pred_fallthru
      _
    %p174 = scmp.lt.s32.totalorder %s11, 2
    // Predicated region
    $region29: #{tpu_custom_call.1} parent=5 // pred_check
      %p175 = pneg %p174
    $region30: #{tpu_custom_call.1} parent=5 // pred_check_branch
      %177 = sbr.rel (%p175) target = $region32
    $region31: #{tpu_custom_call.1} parent=5 // pred_region
      // Predicated region
      $region33: #{tpu_custom_call.1} parent=31 // pred_check
        %p178 = pneg %p31
      $region34: #{tpu_custom_call.1} parent=31 // pred_check_branch
        %180 = sbr.rel (%p178) target = $region36
      $region35: #{tpu_custom_call.1} parent=31 // pred_region
        %p181 = scmp.lt.s32.totalorder %s11, 1
        %s182 = scalar_select %p181, %s11, 1
        %s183 = smul.addr %s182, 54
        %s184 = smul.addr %s183, 8
        %s185 = scalar_lea.vmem %s0, %s184
      $region36: #{tpu_custom_call.1} parent=31 // pred_fallthru
        _
    $region32: #{tpu_custom_call.1} parent=5 // pred_fallthru
      _
    %p186 = scmp.le.s32.totalorder 1, %s11
    %p187 = scmp.lt.s32.totalorder %s11, 3
    %p188 = pnand %p186, %p187
    %p189 = pneg %p188
    // Predicated region
    $region37: #{tpu_custom_call.1} parent=5 // pred_check
      _
    $region38: #{tpu_custom_call.1} parent=5 // pred_check_branch
      %191 = sbr.rel (%p188) target = $region40
    $region39: #{tpu_custom_call.1} parent=5 // pred_region
      %s192 = ssub.s32 %s11, 1
      %p193 = scmp.lt.s32.totalorder %s16, 1
      %s194 = scalar_select %p193, %s16, 1
      %s195 = smul.addr %s194, 54
      %s196 = smul.addr %s195, 8
      %s197 = scalar_lea.vmem %s0, %s196
      %p198 = pneg %p37
      %p199 = pneg %p34
      %p200 = pneg %p58
      %p201 = pneg %p55
      %p202 = pneg %p79
      %p203 = pneg %p76
      %p204 = pneg %p100
      %p205 = pneg %p97
      %p206 = pneg %p121
      %p207 = pneg %p118
      %p208 = pneg %p147
      %p209 = pneg %p144
      %p210 = scmp.lt.s32.totalorder %s16, 1
      %s211 = scalar_select %p210, %s16, 1
      %s212 = smul.addr %s211, 8
      %s213 = smul.addr %s212, 8
      %s214 = scalar_lea.vmem %s5, %s213
      %p215 = scmp.lt.s32.totalorder %s16, 1
      %s216 = scalar_select %p215, %s16, 1
      %s217 = smul.addr %s216, 54
      %s218 = smul.addr %s217, 8
      %s219 = scalar_lea.vmem %s0, %s218
      %p220 = scmp.lt.s32.totalorder %s16, 1
      %s221 = scalar_select %p220, %s16, 1
      %s222 = smul.addr %s221, 8
      %s223 = smul.addr %s222, 8
      %s224 = scalar_lea.vmem %s5, %s223
      %v225 = vld [vmem:[%s219] ss:$2 sm:$0xff]
      %s226 = scalar_lea.vmem %s219, 48
      %v227 = vld [vmem:[%s226] ss:$2 sm:$0xff]
      %s228 = scalar_lea.vmem %s219, 96
      %v229 = vld [vmem:[%s228] ss:$2 sm:$0xff]
      %s230 = scalar_lea.vmem %s219, 144
      %v231 = vld [vmem:[%s230] ss:$2 sm:$0xff]
      %s232 = scalar_lea.vmem %s219, 192
      %v233 = vld [vmem:[%s232] ss:$2 sm:$0xff]
      %s234 = scalar_lea.vmem %s219, 240
      %v235 = vld [vmem:[%s234] ss:$2 sm:$0xff]
      %s236 = scalar_lea.vmem %s219, 288
      %v237 = vld [vmem:[%s236] ss:$2 sm:$0xff]
      %s238 = scalar_lea.vmem %s219, 336
      %v239 = vld [vmem:[%s238] ss:$2 sm:$0xff]
      %v240 = vld [vmem:[%s1] sm:$0x1]
      %v241 = vlaneseq
      %v242 = vshrl.u32 %v241, 7
      %v243 = vsub.s32 0, %v242
      %v244 = vrot.slane %v240, %v243
      %v245 = vmul.f32 %v225, %v244
      %v246 = vmul.f32 %v227, %v244
      %v247 = vmul.f32 %v229, %v244
      %v248 = vmul.f32 %v231, %v244
      %v249 = vmul.f32 %v233, %v244
      %v250 = vmul.f32 %v235, %v244
      %v251 = vmul.f32 %v237, %v244
      %v252 = vmul.f32 %v239, %v244
      %v253 = vadd.f32 %v245, 0.0
      %v254 = vadd.f32 %v246, 0.0
      %v255 = vadd.f32 %v247, 0.0
      %v256 = vadd.f32 %v248, 0.0
      %v257 = vadd.f32 %v249, 0.0
      %v258 = vadd.f32 %v250, 0.0
      %v259 = vadd.f32 %v251, 0.0
      %v260 = vadd.f32 %v252, 0.0
      %s261 = scalar_lea.vmem %s219, 1
      %v262 = vld [vmem:[%s261] ss:$2 sm:$0xff]
      %s263 = scalar_lea.vmem %s219, 49
      %v264 = vld [vmem:[%s263] ss:$2 sm:$0xff]
      %s265 = scalar_lea.vmem %s219, 97
      %v266 = vld [vmem:[%s265] ss:$2 sm:$0xff]
      %s267 = scalar_lea.vmem %s219, 145
      %v268 = vld [vmem:[%s267] ss:$2 sm:$0xff]
      %s269 = scalar_lea.vmem %s219, 193
      %v270 = vld [vmem:[%s269] ss:$2 sm:$0xff]
      %s271 = scalar_lea.vmem %s219, 241
      %v272 = vld [vmem:[%s271] ss:$2 sm:$0xff]
      %s273 = scalar_lea.vmem %s219, 289
      %v274 = vld [vmem:[%s273] ss:$2 sm:$0xff]
      %s275 = scalar_lea.vmem %s219, 337
      %v276 = vld [vmem:[%s275] ss:$2 sm:$0xff]
      %v277 = vld [vmem:[%s1 + $0x1] sm:$0x1]
      %v278 = vlaneseq
      %v279 = vshrl.u32 %v278, 7
      %v280 = vsub.s32 0, %v279
      %v281 = vrot.slane %v277, %v280
      %v282 = vmul.f32 %v262, %v281
      %v283 = vmul.f32 %v264, %v281
      %v284 = vmul.f32 %v266, %v281
      %v285 = vmul.f32 %v268, %v281
      %v286 = vmul.f32 %v270, %v281
      %v287 = vmul.f32 %v272, %v281
      %v288 = vmul.f32 %v274, %v281
      %v289 = vmul.f32 %v276, %v281
      %v290 = vadd.f32 %v253, %v282
      %v291 = vadd.f32 %v254, %v283
      %v292 = vadd.f32 %v255, %v284
      %v293 = vadd.f32 %v256, %v285
      %v294 = vadd.f32 %v257, %v286
      %v295 = vadd.f32 %v258, %v287
      %v296 = vadd.f32 %v259, %v288
      %v297 = vadd.f32 %v260, %v289
      %s298 = scalar_lea.vmem %s219, 2
      %v299 = vld [vmem:[%s298] ss:$2 sm:$0xff]
      %s300 = scalar_lea.vmem %s219, 50
      %v301 = vld [vmem:[%s300] ss:$2 sm:$0xff]
      %s302 = scalar_lea.vmem %s219, 98
      %v303 = vld [vmem:[%s302] ss:$2 sm:$0xff]
      %s304 = scalar_lea.vmem %s219, 146
      %v305 = vld [vmem:[%s304] ss:$2 sm:$0xff]
      %s306 = scalar_lea.vmem %s219, 194
      %v307 = vld [vmem:[%s306] ss:$2 sm:$0xff]
      %s308 = scalar_lea.vmem %s219, 242
      %v309 = vld [vmem:[%s308] ss:$2 sm:$0xff]
      %s310 = scalar_lea.vmem %s219, 290
      %v311 = vld [vmem:[%s310] ss:$2 sm:$0xff]
      %s312 = scalar_lea.vmem %s219, 338
      %v313 = vld [vmem:[%s312] ss:$2 sm:$0xff]
      %v314 = vld [vmem:[%s1 + $0x2] sm:$0x1]
      %v315 = vlaneseq
      %v316 = vshrl.u32 %v315, 7
      %v317 = vsub.s32 0, %v316
      %v318 = vrot.slane %v314, %v317
      %v319 = vmul.f32 %v299, %v318
      %v320 = vmul.f32 %v301, %v318
      %v321 = vmul.f32 %v303, %v318
      %v322 = vmul.f32 %v305, %v318
      %v323 = vmul.f32 %v307, %v318
      %v324 = vmul.f32 %v309, %v318
      %v325 = vmul.f32 %v311, %v318
      %v326 = vmul.f32 %v313, %v318
      %v327 = vadd.f32 %v290, %v319
      %v328 = vadd.f32 %v291, %v320
      %v329 = vadd.f32 %v292, %v321
      %v330 = vadd.f32 %v293, %v322
      %v331 = vadd.f32 %v294, %v323
      %v332 = vadd.f32 %v295, %v324
      %v333 = vadd.f32 %v296, %v325
      %v334 = vadd.f32 %v297, %v326
      %s335 = scalar_lea.vmem %s219, 24
      %v336 = vld [vmem:[%s335] ss:$2 sm:$0xff]
      %s337 = scalar_lea.vmem %s335, 48
      %v338 = vld [vmem:[%s337] ss:$2 sm:$0xff]
      %s339 = scalar_lea.vmem %s335, 96
      %v340 = vld [vmem:[%s339] ss:$2 sm:$0xff]
      %s341 = scalar_lea.vmem %s335, 144
      %v342 = vld [vmem:[%s341] ss:$2 sm:$0xff]
      %s343 = scalar_lea.vmem %s335, 192
      %v344 = vld [vmem:[%s343] ss:$2 sm:$0xff]
      %s345 = scalar_lea.vmem %s335, 240
      %v346 = vld [vmem:[%s345] ss:$2 sm:$0xff]
      %s347 = scalar_lea.vmem %s335, 288
      %v348 = vld [vmem:[%s347] ss:$2 sm:$0xff]
      %s349 = scalar_lea.vmem %s335, 336
      %v350 = vld [vmem:[%s349] ss:$2 sm:$0xff]
      %s351 = scalar_lea.vmem %s1, 4
      %v352 = vld [vmem:[%s351] sm:$0x1]
      %v353 = vlaneseq
      %v354 = vshrl.u32 %v353, 7
      %v355 = vsub.s32 0, %v354
      %v356 = vrot.slane %v352, %v355
      %v357 = vmul.f32 %v336, %v356
      %v358 = vmul.f32 %v338, %v356
      %v359 = vmul.f32 %v340, %v356
      %v360 = vmul.f32 %v342, %v356
      %v361 = vmul.f32 %v344, %v356
      %v362 = vmul.f32 %v346, %v356
      %v363 = vmul.f32 %v348, %v356
      %v364 = vmul.f32 %v350, %v356
      %v365 = vadd.f32 %v327, %v357
      %v366 = vadd.f32 %v328, %v358
      %v367 = vadd.f32 %v329, %v359
      %v368 = vadd.f32 %v330, %v360
      %v369 = vadd.f32 %v331, %v361
      %v370 = vadd.f32 %v332, %v362
      %v371 = vadd.f32 %v333, %v363
      %v372 = vadd.f32 %v334, %v364
      %s373 = scalar_lea.vmem %s335, 1
      %v374 = vld [vmem:[%s373] ss:$2 sm:$0xff]
      %s375 = scalar_lea.vmem %s335, 49
      %v376 = vld [vmem:[%s375] ss:$2 sm:$0xff]
      %s377 = scalar_lea.vmem %s335, 97
      %v378 = vld [vmem:[%s377] ss:$2 sm:$0xff]
      %s379 = scalar_lea.vmem %s335, 145
      %v380 = vld [vmem:[%s379] ss:$2 sm:$0xff]
      %s381 = scalar_lea.vmem %s335, 193
      %v382 = vld [vmem:[%s381] ss:$2 sm:$0xff]
      %s383 = scalar_lea.vmem %s335, 241
      %v384 = vld [vmem:[%s383] ss:$2 sm:$0xff]
      %s385 = scalar_lea.vmem %s335, 289
      %v386 = vld [vmem:[%s385] ss:$2 sm:$0xff]
      %s387 = scalar_lea.vmem %s335, 337
      %v388 = vld [vmem:[%s387] ss:$2 sm:$0xff]
      %v389 = vld [vmem:[%s351 + $0x1] sm:$0x1]
      %v390 = vlaneseq
      %v391 = vshrl.u32 %v390, 7
      %v392 = vsub.s32 0, %v391
      %v393 = vrot.slane %v389, %v392
      %v394 = vmul.f32 %v374, %v393
      %v395 = vmul.f32 %v376, %v393
      %v396 = vmul.f32 %v378, %v393
      %v397 = vmul.f32 %v380, %v393
      %v398 = vmul.f32 %v382, %v393
      %v399 = vmul.f32 %v384, %v393
      %v400 = vmul.f32 %v386, %v393
      %v401 = vmul.f32 %v388, %v393
      %v402 = vadd.f32 %v365, %v394
      %v403 = vadd.f32 %v366, %v395
      %v404 = vadd.f32 %v367, %v396
      %v405 = vadd.f32 %v368, %v397
      %v406 = vadd.f32 %v369, %v398
      %v407 = vadd.f32 %v370, %v399
      %v408 = vadd.f32 %v371, %v400
      %v409 = vadd.f32 %v372, %v401
      %s410 = scalar_lea.vmem %s335, 2
      %v411 = vld [vmem:[%s410] ss:$2 sm:$0xff]
      %s412 = scalar_lea.vmem %s335, 50
      %v413 = vld [vmem:[%s412] ss:$2 sm:$0xff]
      %s414 = scalar_lea.vmem %s335, 98
      %v415 = vld [vmem:[%s414] ss:$2 sm:$0xff]
      %s416 = scalar_lea.vmem %s335, 146
      %v417 = vld [vmem:[%s416] ss:$2 sm:$0xff]
      %s418 = scalar_lea.vmem %s335, 194
      %v419 = vld [vmem:[%s418] ss:$2 sm:$0xff]
      %s420 = scalar_lea.vmem %s335, 242
      %v421 = vld [vmem:[%s420] ss:$2 sm:$0xff]
      %s422 = scalar_lea.vmem %s335, 290
      %v423 = vld [vmem:[%s422] ss:$2 sm:$0xff]
      %s424 = scalar_lea.vmem %s335, 338
      %v425 = vld [vmem:[%s424] ss:$2 sm:$0xff]
      %v426 = vld [vmem:[%s351 + $0x2] sm:$0x1]
      %v427 = vlaneseq
      %v428 = vshrl.u32 %v427, 7
      %v429 = vsub.s32 0, %v428
      %v430 = vrot.slane %v426, %v429
      %v431 = vmul.f32 %v411, %v430
      %v432 = vmul.f32 %v413, %v430
      %v433 = vmul.f32 %v415, %v430
      %v434 = vmul.f32 %v417, %v430
      %v435 = vmul.f32 %v419, %v430
      %v436 = vmul.f32 %v421, %v430
      %v437 = vmul.f32 %v423, %v430
      %v438 = vmul.f32 %v425, %v430
      %v439 = vadd.f32 %v402, %v431
      %v440 = vadd.f32 %v403, %v432
      %v441 = vadd.f32 %v404, %v433
      %v442 = vadd.f32 %v405, %v434
      %v443 = vadd.f32 %v406, %v435
      %v444 = vadd.f32 %v407, %v436
      %v445 = vadd.f32 %v408, %v437
      %v446 = vadd.f32 %v409, %v438
      %s447 = scalar_lea.vmem %s219, 48
      %v448 = vld [vmem:[%s447] ss:$2 sm:$0xff]
      %s449 = scalar_lea.vmem %s447, 48
      %v450 = vld [vmem:[%s449] ss:$2 sm:$0xff]
      %s451 = scalar_lea.vmem %s447, 96
      %v452 = vld [vmem:[%s451] ss:$2 sm:$0xff]
      %s453 = scalar_lea.vmem %s447, 144
      %v454 = vld [vmem:[%s453] ss:$2 sm:$0xff]
      %s455 = scalar_lea.vmem %s447, 192
      %v456 = vld [vmem:[%s455] ss:$2 sm:$0xff]
      %s457 = scalar_lea.vmem %s447, 240
      %v458 = vld [vmem:[%s457] ss:$2 sm:$0xff]
      %s459 = scalar_lea.vmem %s447, 288
      %v460 = vld [vmem:[%s459] ss:$2 sm:$0xff]
      %s461 = scalar_lea.vmem %s447, 336
      %v462 = vld [vmem:[%s461] ss:$2 sm:$0xff]
      %s463 = scalar_lea.vmem %s1, 8
      %v464 = vld [vmem:[%s463] sm:$0x1]
      %v465 = vlaneseq
      %v466 = vshrl.u32 %v465, 7
      %v467 = vsub.s32 0, %v466
      %v468 = vrot.slane %v464, %v467
      %v469 = vmul.f32 %v448, %v468
      %v470 = vmul.f32 %v450, %v468
      %v471 = vmul.f32 %v452, %v468
      %v472 = vmul.f32 %v454, %v468
      %v473 = vmul.f32 %v456, %v468
      %v474 = vmul.f32 %v458, %v468
      %v475 = vmul.f32 %v460, %v468
      %v476 = vmul.f32 %v462, %v468
      %v477 = vadd.f32 %v439, %v469
      %v478 = vadd.f32 %v440, %v470
      %v479 = vadd.f32 %v441, %v471
      %v480 = vadd.f32 %v442, %v472
      %v481 = vadd.f32 %v443, %v473
      %v482 = vadd.f32 %v444, %v474
      %v483 = vadd.f32 %v445, %v475
      %v484 = vadd.f32 %v446, %v476
      %s485 = scalar_lea.vmem %s447, 1
      %v486 = vld [vmem:[%s485] ss:$2 sm:$0xff]
      %s487 = scalar_lea.vmem %s447, 49
      %v488 = vld [vmem:[%s487] ss:$2 sm:$0xff]
      %s489 = scalar_lea.vmem %s447, 97
      %v490 = vld [vmem:[%s489] ss:$2 sm:$0xff]
      %s491 = scalar_lea.vmem %s447, 145
      %v492 = vld [vmem:[%s491] ss:$2 sm:$0xff]
      %s493 = scalar_lea.vmem %s447, 193
      %v494 = vld [vmem:[%s493] ss:$2 sm:$0xff]
      %s495 = scalar_lea.vmem %s447, 241
      %v496 = vld [vmem:[%s495] ss:$2 sm:$0xff]
      %s497 = scalar_lea.vmem %s447, 289
      %v498 = vld [vmem:[%s497] ss:$2 sm:$0xff]
      %s499 = scalar_lea.vmem %s447, 337
      %v500 = vld [vmem:[%s499] ss:$2 sm:$0xff]
      %v501 = vld [vmem:[%s463 + $0x1] sm:$0x1]
      %v502 = vlaneseq
      %v503 = vshrl.u32 %v502, 7
      %v504 = vsub.s32 0, %v503
      %v505 = vrot.slane %v501, %v504
      %v506 = vmul.f32 %v486, %v505
      %v507 = vmul.f32 %v488, %v505
      %v508 = vmul.f32 %v490, %v505
      %v509 = vmul.f32 %v492, %v505
      %v510 = vmul.f32 %v494, %v505
      %v511 = vmul.f32 %v496, %v505
      %v512 = vmul.f32 %v498, %v505
      %v513 = vmul.f32 %v500, %v505
      %v514 = vadd.f32 %v477, %v506
      %v515 = vadd.f32 %v478, %v507
      %v516 = vadd.f32 %v479, %v508
      %v517 = vadd.f32 %v480, %v509
      %v518 = vadd.f32 %v481, %v510
      %v519 = vadd.f32 %v482, %v511
      %v520 = vadd.f32 %v483, %v512
      %v521 = vadd.f32 %v484, %v513
      %s522 = scalar_lea.vmem %s447, 2
      %v523 = vld [vmem:[%s522] ss:$2 sm:$0xff]
      %s524 = scalar_lea.vmem %s447, 50
      %v525 = vld [vmem:[%s524] ss:$2 sm:$0xff]
      %s526 = scalar_lea.vmem %s447, 98
      %v527 = vld [vmem:[%s526] ss:$2 sm:$0xff]
      %s528 = scalar_lea.vmem %s447, 146
      %v529 = vld [vmem:[%s528] ss:$2 sm:$0xff]
      %s530 = scalar_lea.vmem %s447, 194
      %v531 = vld [vmem:[%s530] ss:$2 sm:$0xff]
      %s532 = scalar_lea.vmem %s447, 242
      %v533 = vld [vmem:[%s532] ss:$2 sm:$0xff]
      %s534 = scalar_lea.vmem %s447, 290
      %v535 = vld [vmem:[%s534] ss:$2 sm:$0xff]
      %s536 = scalar_lea.vmem %s447, 338
      %v537 = vld [vmem:[%s536] ss:$2 sm:$0xff]
      %v538 = vld [vmem:[%s463 + $0x2] sm:$0x1]
      %v539 = vlaneseq
      %v540 = vshrl.u32 %v539, 7
      %v541 = vsub.s32 0, %v540
      %v542 = vrot.slane %v538, %v541
      %v543 = vmul.f32 %v523, %v542
      %v544 = vmul.f32 %v525, %v542
      %v545 = vmul.f32 %v527, %v542
      %v546 = vmul.f32 %v529, %v542
      %v547 = vmul.f32 %v531, %v542
      %v548 = vmul.f32 %v533, %v542
      %v549 = vmul.f32 %v535, %v542
      %v550 = vmul.f32 %v537, %v542
      %v551 = vadd.f32 %v514, %v543
      %v552 = vadd.f32 %v515, %v544
      %v553 = vadd.f32 %v516, %v545
      %v554 = vadd.f32 %v517, %v546
      %v555 = vadd.f32 %v518, %v547
      %v556 = vadd.f32 %v519, %v548
      %v557 = vadd.f32 %v520, %v549
      %v558 = vadd.f32 %v521, %v550
      %v559 = vld [vmem:[%s2] sm:$0x1]
      %v561 = vlaneseq
      %v562 = vshrl.u32 %v561, 7
      %v563 = vsub.s32 0, %v562
      %v564 = vrot.slane %v559, %v563
      %v566 = vadd.f32 %v551, %v564
      %v567 = vadd.f32 %v552, %v564
      %v568 = vadd.f32 %v553, %v564
      %v569 = vadd.f32 %v554, %v564
      %v570 = vadd.f32 %v555, %v564
      %v571 = vadd.f32 %v556, %v564
      %v572 = vadd.f32 %v557, %v564
      %v573 = vadd.f32 %v558, %v564
      %v574 = vmax.f32 %v566, 0.0
      %v575 = vmax.f32 %v567, 0.0
      %v576 = vmax.f32 %v568, 0.0
      %v577 = vmax.f32 %v569, 0.0
      %v578 = vmax.f32 %v570, 0.0
      %v579 = vmax.f32 %v571, 0.0
      %v580 = vmax.f32 %v572, 0.0
      %v581 = vmax.f32 %v573, 0.0
      %v582 = vld [vmem:[%s3] sm:$0xf]
      %v583 = vld [vmem:[%s4] sm:$0x1]
      %v585 = vlaneseq
      %v586 = vshrl.u32 %v585, 7
      %v587 = vsub.s32 0, %v586
      %v588 = vrot.slane %v583, %v587
      %vm590 = vcmask 31744
      %v592 = vsel %vm590, %v574, 0
      %v595 = vsel %vm590, %v575, 0
      %v598 = vsel %vm590, %v576, 0
      %v601 = vsel %vm590, %v577, 0
      %v604 = vsel %vm590, %v578, 0
      %v607 = vsel %vm590, %v579, 0
      %v610 = vsel %vm590, %v580, 0
      %v613 = vsel %vm590, %v581, 0
      %vm615 = vcmask 1043456
      %v617 = vsel %vm615, %v582, 0
      %619 = vmatprep.subr.mxu0 0.0
      %620 = vmatpush1.msra.mxu0 0.0
      %621 = vmatprep.subr.mxu0 0.0
      %622 = vmatpush1.msra.mxu0 0.0
      %623 = vmatprep.subr.mxu0 0.0
      %624 = vmatpush1.msra.mxu0 0.0
      %625 = vmatprep.subr.mxu0 0.0
      %626 = vmatpush1.msra.mxu0 0.0
      %627 = vmatprep.subr.mxu0 0.0
      %628 = vmatpush1.msra.mxu0 0.0
      %629 = vmatprep.subr.mxu0 0.0
      %630 = vmatpush1.msra.mxu0 0.0
      %631 = vmatprep.subr.mxu0 0.0
      %632 = vmatpush1.msra.mxu0 0.0
      %633 = vmatprep.subr.mxu0 0.0
      %634 = vmatpush1.msra.mxu0 0.0
      %635 = vmatprep.subr.mxu0 0.0
      %636 = vmatpush1.msra.mxu0 0.0
      %637 = vmatprep.subr.mxu0 0.0
      %638 = vmatpush1.msra.mxu0 0.0
      %639 = vmatprep.subr.mxu0 0.0
      %640 = vmatpush1.msra.mxu0 0.0
      %641 = vmatprep.subr.mxu0 0.0
      %642 = vmatpush1.msra.mxu0 0.0
      %643 = vmatprep.subr.mxu0 0.0
      %644 = vmatpush1.msra.mxu0 0.0
      %645 = vmatprep.subr.mxu0 0.0
      %646 = vmatpush1.msra.mxu0 0.0
      %647 = vmatprep.subr.mxu0 0.0
      %648 = vmatpush1.msra.mxu0 0.0
      %649 = vmatprep.subr.mxu0 0.0
      %650 = vmatpush1.msra.mxu0 %v617
      %651 = vmatprep.subr.mxu0 0.0
      %652 = vmatpush2.msra.mxu0 0.0
      %653 = vmatprep.subr.mxu0 0.0
      %654 = vmatpush2.msra.mxu0 0.0
      %655 = vmatprep.subr.mxu0 0.0
      %656 = vmatpush2.msra.mxu0 0.0
      %657 = vmatprep.subr.mxu0 0.0
      %658 = vmatpush2.msra.mxu0 0.0
      %659 = vmatprep.subr.mxu0 0.0
      %660 = vmatpush2.msra.mxu0 0.0
      %661 = vmatprep.subr.mxu0 0.0
      %662 = vmatpush2.msra.mxu0 0.0
      %663 = vmatprep.subr.mxu0 0.0
      %664 = vmatpush2.msra.mxu0 0.0
      %665 = vmatprep.subr.mxu0 0.0
      %666 = vmatpush2.msra.mxu0 0.0
      %667 = vmatprep.subr.mxu0 0.0
      %668 = vmatpush2.msra.mxu0 0.0
      %669 = vmatprep.subr.mxu0 0.0
      %670 = vmatpush2.msra.mxu0 0.0
      %671 = vmatprep.subr.mxu0 0.0
      %672 = vmatpush2.msra.mxu0 0.0
      %673 = vmatprep.subr.mxu0 0.0
      %674 = vmatpush2.msra.mxu0 0.0
      %675 = vmatprep.subr.mxu0 0.0
      %676 = vmatpush2.msra.mxu0 0.0
      %677 = vmatprep.subr.mxu0 0.0
      %678 = vmatpush2.msra.mxu0 0.0
      %679 = vmatprep.subr.mxu0 0.0
      %680 = vmatpush2.msra.mxu0 0.0
      %681 = vmatprep.subr.mxu0 0.0
      %682 = vmatpush2.msra.mxu0 0.0
      %683 = vmatprep.mubr.f32.mxu0 0.0
      %684 = vmatmul.mubr.f32.gmra.mxu0 %v592
      %v685 = vpop.f32.mrf.mxu0
      %v686 = vadd.f32 %v588, %v685
      %v687 = vpop.f32.mrf.mxu0
      %688 = vmatprep.mubr.f32.mxu0 0.0
      %689 = vmatmul.mubr.f32.gmra.mxu0 %v595
      %v690 = vpop.f32.mrf.mxu0
      %v691 = vadd.f32 %v588, %v690
      %v692 = vpop.f32.mrf.mxu0
      %693 = vmatprep.mubr.f32.mxu0 0.0
      %694 = vmatmul.mubr.f32.gmra.mxu0 %v598
      %v695 = vpop.f32.mrf.mxu0
      %v696 = vadd.f32 %v588, %v695
      %v697 = vpop.f32.mrf.mxu0
      %698 = vmatprep.mubr.f32.mxu0 0.0
      %699 = vmatmul.mubr.f32.gmra.mxu0 %v601
      %v700 = vpop.f32.mrf.mxu0
      %v701 = vadd.f32 %v588, %v700
      %v702 = vpop.f32.mrf.mxu0
      %703 = vmatprep.mubr.f32.mxu0 0.0
      %704 = vmatmul.mubr.f32.gmra.mxu0 %v604
      %v705 = vpop.f32.mrf.mxu0
      %v706 = vadd.f32 %v588, %v705
      %v707 = vpop.f32.mrf.mxu0
      %708 = vmatprep.mubr.f32.mxu0 0.0
      %709 = vmatmul.mubr.f32.gmra.mxu0 %v607
      %v710 = vpop.f32.mrf.mxu0
      %v711 = vadd.f32 %v588, %v710
      %v712 = vpop.f32.mrf.mxu0
      %713 = vmatprep.mubr.f32.mxu0 0.0
      %714 = vmatmul.mubr.f32.gmra.mxu0 %v610
      %v715 = vpop.f32.mrf.mxu0
      %v716 = vadd.f32 %v588, %v715
      %v717 = vpop.f32.mrf.mxu0
      %718 = vmatprep.mubr.f32.mxu0 0.0
      %719 = vmatmul.mubr.f32.gmra.mxu0 %v613
      %v720 = vpop.f32.mrf.mxu0
      %v721 = vadd.f32 %v588, %v720
      %v722 = vpop.f32.mrf.mxu0
      %723 = vdwg.mxu0
      %v724 = vmax.f32 %v686, 0.0
      %v725 = vmax.f32 %v691, 0.0
      %v726 = vmax.f32 %v696, 0.0
      %v727 = vmax.f32 %v701, 0.0
      %v728 = vmax.f32 %v706, 0.0
      %v729 = vmax.f32 %v711, 0.0
      %v730 = vmax.f32 %v716, 0.0
      %v731 = vmax.f32 %v721, 0.0
      %vm732 = vcmask 64512
      %733 = vst.msk [vmem:[%s224] sm:$0xff] %vm732, %v724
      %734 = vst.msk [vmem:[%s224 + $0x8] sm:$0xff] %vm732, %v725
      %735 = vst.msk [vmem:[%s224 + $0x10] sm:$0xff] %vm732, %v726
      %736 = vst.msk [vmem:[%s224 + $0x18] sm:$0xff] %vm732, %v727
      %737 = vst.msk [vmem:[%s224 + $0x20] sm:$0xff] %vm732, %v728
      %738 = vst.msk [vmem:[%s224 + $0x28] sm:$0xff] %vm732, %v729
      %739 = vst.msk [vmem:[%s224 + $0x30] sm:$0xff] %vm732, %v730
      %740 = vst.msk [vmem:[%s224 + $0x38] sm:$0xff] %vm732, %v731
      %p741 = scmp.lt.s32.totalorder %s16, 1
      %s742 = scalar_select %p741, %s16, 1
      %s743 = smul.addr %s742, 8
      %s744 = smul.addr %s743, 8
      %s745 = scalar_lea.vmem %s5, %s744
      // Predicated region
      $region41: #{tpu_custom_call.1} parent=39 // pred_check
        %p746 = pneg %p144
      $region42: #{tpu_custom_call.1} parent=39 // pred_check_branch
        %748 = sbr.rel (%p746) target = $region44
      $region43: #{tpu_custom_call.1} parent=39 // pred_region
        _
      $region44: #{tpu_custom_call.1} parent=39 // pred_fallthru
        _
    $region40: #{tpu_custom_call.1} parent=5 // pred_fallthru
      _
    %p749 = scmp.le.s32.totalorder 2, %s11
    // Predicated region
    $region45: #{tpu_custom_call.1} parent=5 // pred_check
      %p750 = pneg %p749
    $region46: #{tpu_custom_call.1} parent=5 // pred_check_branch
      %752 = sbr.rel (%p750) target = $region48
    $region47: #{tpu_custom_call.1} parent=5 // pred_region
      %s753 = ssub.s32 %s11, 2
      // Predicated region
      $region49: #{tpu_custom_call.1} parent=47 // pred_check
        %p754 = pneg %p150
      $region50: #{tpu_custom_call.1} parent=47 // pred_check_branch
        %756 = sbr.rel (%p754) target = $region52
      $region51: #{tpu_custom_call.1} parent=47 // pred_region
        %p757 = scmp.lt.s32.totalorder %s17, 1
        %s758 = scalar_select %p757, %s17, 1
        %s759 = smul.addr %s758, 8
        %s760 = smul.addr %s759, 8
        %s761 = scalar_lea.vmem %s5, %s760
      $region52: #{tpu_custom_call.1} parent=47 // pred_fallthru
        _
    $region48: #{tpu_custom_call.1} parent=5 // pred_fallthru
      _
  $region6: #{tpu_custom_call.1} parent=0 // loop_footer
    %s15 = sadd.s32 1, %s11
  $region7: #{tpu_custom_call.1} parent=0 // loop_footer_branch
    %10 = sbr.rel target = $region3
  $region8: #{tpu_custom_call.1} parent=0 // loop_exit
    _

</llo_original>
